<compile_context>
chip_gen: v7x
topology: tpu7x:2x2x1
jax: 0.10.0
libtpu: 0.0.40
codegen_flags: <defaults>
</compile_context>

<pallas_src>
import functools

import jax
import jax.numpy as jnp
from jax.experimental import pallas as pl
from jax.experimental.pallas import tpu as pltpu

_LANES = 128                       # vreg lane width
_SUBLANES = 8                      # f32 sublane count
_MAX_FULL_COLS = 8192              # keep full width as one column tile up to this
_COL_TILE = 1024                   # column tile when wider than _MAX_FULL_COLS
_TARGET_BLOCK_BYTES = 4 * 1024 * 1024   # per input per pipeline buffer (native dtype)
_VMEM_LIMIT_BYTES = 32 * 1024 * 1024    # explicit; safe on v5e/v6e/v7x
_MIN_PALLAS_ELEMENTS = 2 * 1024 * 1024  # below this, fused XLA reduction wins


def _round_up(x, m):
    return ((x + m - 1) // m) * m


# ---------------------------------------------------------------------------
# Elementwise loss definitions (shared by the Pallas kernel, the small-N
# fallback and the reference check).  They always receive f32 values.
# ---------------------------------------------------------------------------
def _bce_with_logits_elemwise(x, t):
    # Numerically stable BCE-with-logits (matches PyTorch):
    #   l(x, t) = max(x, 0) - x*t + log(1 + exp(-|x|))
    return jnp.maximum(x, 0.0) - x * t + jnp.log1p(jnp.exp(-jnp.abs(x)))


def _weighted_bce_elemwise(p, t):
    # F.binary_cross_entropy(p, t, weight=t) (weight == target, as in pythia's
    # AttentionSupervisionLoss).  Logs clamped at -100 like PyTorch.
    log_p = jnp.maximum(jnp.log(p), -100.0)
    log_1mp = jnp.maximum(jnp.log1p(-p), -100.0)
    return -t * (t * log_p + (1.0 - t) * log_1mp)


# ---------------------------------------------------------------------------
# Pallas kernel: tiled sum of elementwise_fn(x, t) over a (rows, cols) tensor.
# Grid = (cores, row_tiles_per_core, col_tiles); each core accumulates into its
# own VMEM vector accumulator and writes one (8,128) output block at the end.
# ---------------------------------------------------------------------------
def _partial_sum_kernel(x_ref, t_ref, out_ref, acc_ref, *, elementwise_fn,
                        rows, cols, tile_r, tile_c, tiles_per_core):
    c = pl.program_id(0)
    i = pl.program_id(1)
    j = pl.program_id(2)
    num_cores = pl.num_programs(0)
    ni = pl.num_programs(1)
    nj = pl.num_programs(2)

    @pl.when(jnp.logical_and(i == 0, j == 0))
    def _init():
        acc_ref[...] = jnp.zeros_like(acc_ref)

    # In-kernel upcast: inputs stay in their native dtype in HBM (no extra
    # host-side cast / HBM pass); the VPU cast is hidden under the DMA.
    x = x_ref[...].astype(jnp.float32)
    t = t_ref[...].astype(jnp.float32)
    per_elem = elementwise_fn(x, t)

    # Fold rows in groups of 8 with pure VALU adds into a small accumulator;
    # the single cross-lane/sublane reduce happens only at finalize.
    fold = (tile_r % _SUBLANES == 0) and (tile_r > _SUBLANES)

    def _accumulate(vals):
        if fold:
            vals = jnp.sum(
                vals.reshape(tile_r // _SUBLANES, _SUBLANES, tile_c), axis=0)
        acc_ref[...] = acc_ref[...] + vals

    row_edge = (rows % tile_r) != 0     # static
    col_edge = (cols % tile_c) != 0     # static

    if row_edge or col_edge:
        is_edge = jnp.bool_(False)
        if row_edge:
            is_edge = jnp.logical_or(
                is_edge, jnp.logical_and(c == num_cores - 1, i == ni - 1))
        if col_edge:
            is_edge = jnp.logical_or(is_edge, j == nj - 1)

        @pl.when(jnp.logical_not(is_edge))
        def _interior():                     # unmasked fast path
            _accumulate(per_elem)

        @pl.when(is_edge)
        def _edge():                         # mask only the edge tiles
            shape = per_elem.shape
            row_ids = ((c * tiles_per_core + i) * tile_r
                       + jax.lax.broadcasted_iota(jnp.int32, shape, 0))
            col_ids = (j * tile_c
                       + jax.lax.broadcasted_iota(jnp.int32, shape, 1))
            valid = jnp.logical_and(row_ids < rows, col_ids < cols)
            _accumulate(jnp.where(valid, per_elem, 0.0))
    else:
        _accumulate(per_elem)

    @pl.when(jnp.logical_and(i == ni - 1, j == nj - 1))
    def _finalize():
        out_ref[...] = jnp.broadcast_to(jnp.sum(acc_ref[...]), out_ref.shape)


def _pallas_mean(x, t, elementwise_fn, *, block_bytes=_TARGET_BLOCK_BYTES):
    """mean(elementwise_fn(x, t)) over all elements via a tiled Pallas kernel."""
    n = x.size

    # Flatten to 2-D without any copy or pad (metadata-only reshape); partial
    # edge tiles are handled by in-kernel masking.
    if x.ndim == 0:
        x, t = x.reshape(1, 1), t.reshape(1, 1)
    elif x.ndim == 1:
        x, t = x.reshape(1, -1), t.reshape(1, -1)
    elif x.ndim > 2:
        x, t = x.reshape(-1, x.shape[-1]), t.reshape(-1, t.shape[-1])
    rows, cols = x.shape

    itemsize = max(x.dtype.itemsize, t.dtype.itemsize)

    # Column tiling: keep the full width as a single tile when modest.
    tile_c = cols if cols <= _MAX_FULL_COLS else _COL_TILE
    num_col_tiles = pl.cdiv(cols, tile_c)

    # Row tiling from a per-input per-buffer byte budget in the NATIVE dtype
    # (so bf16 inputs get 2x the elements per grid step).
    budget_rows = max(block_bytes // (tile_c * itemsize), _SUBLANES)
    if budget_rows >= rows:
        tile_r = rows
    else:
        tile_r = max((budget_rows // _SUBLANES) * _SUBLANES, _SUBLANES)
    num_row_tiles = pl.cdiv(rows, tile_r)

    # v7x: split the reduction across both TensorCores via a leading "parallel"
    # grid axis (harmless serial loop on single-TC v5e/v6e).  Only enabled when
    # the row tiles split evenly (no out-of-range phantom blocks); if the tile
    # count is odd, try one slightly smaller tile size first.
    if num_row_tiles > 1 and num_row_tiles % 2 != 0:
        alt_r = _round_up(pl.cdiv(rows, num_row_tiles + 1), _SUBLANES)
        if alt_r >= _SUBLANES and pl.cdiv(rows, alt_r) % 2 == 0:
            tile_r = alt_r
            num_row_tiles = pl.cdiv(rows, tile_r)
    num_cores = 2 if (num_row_tiles >= 2 and num_row_tiles % 2 == 0) else 1
    tiles_per_core = num_row_tiles // num_cores

    acc_rows = _SUBLANES if tile_r % _SUBLANES == 0 else tile_r

    kernel = functools.partial(
        _partial_sum_kernel, elementwise_fn=elementwise_fn,
        rows=rows, cols=cols, tile_r=tile_r, tile_c=tile_c,
        tiles_per_core=tiles_per_core)

    in_map = lambda c, i, j: (c * tiles_per_core + i, j)

    out = pl.pallas_call(
        kernel,
        out_shape=jax.ShapeDtypeStruct((num_cores * _SUBLANES, _LANES),
                                       jnp.float32),
        grid=(num_cores, tiles_per_core, num_col_tiles),
        in_specs=[
            pl.BlockSpec((tile_r, tile_c), in_map),
            pl.BlockSpec((tile_r, tile_c), in_map),
        ],
        out_specs=pl.BlockSpec((_SUBLANES, _LANES), lambda c, i, j: (c, 0)),
        scratch_shapes=[pltpu.VMEM((acc_rows, tile_c), jnp.float32)],
        compiler_params=pltpu.CompilerParams(
            dimension_semantics=("parallel", "arbitrary", "arbitrary"),
            vmem_limit_bytes=_VMEM_LIMIT_BYTES),
    )(x, t)

    total = jnp.sum(out[0::_SUBLANES, 0])       # sum the per-core partials
    return total / float(n)


def _mean_elementwise_loss(x, t, elementwise_fn, *, force_pallas=False,
                           block_bytes=_TARGET_BLOCK_BYTES):
    x = jnp.asarray(x)
    t = jnp.asarray(t)
    assert x.shape == t.shape, (x.shape, t.shape)
    if not force_pallas and x.size < _MIN_PALLAS_ELEMENTS:
        # Small/medium inputs: a fused XLA reduction is already at the HBM
        # roofline and avoids launch + scalar-readback overhead.
        return jnp.mean(elementwise_fn(x.astype(jnp.float32),
                                       t.astype(jnp.float32)))
    return _pallas_mean(x, t, elementwise_fn, block_bytes=block_bytes)


# ---------------------------------------------------------------------------
# Registered component losses (the docstring example of MultiLoss).
# ---------------------------------------------------------------------------
def logit_bce(sample_list, model_output, **kwargs):
    scores = model_output["scores"]
    targets = sample_list["targets"]
    loss = _mean_elementwise_loss(scores, targets, _bce_with_logits_elemwise,
                                  **kwargs)
    return loss * targets.shape[1]          # pythia: mean * targets.size(1)


def attention_supervision(sample_list, model_output, **kwargs):
    attn = model_output["attentions"][0]
    sup = sample_list["attention_supervision"]
    loss = _mean_elementwise_loss(attn, sup, _weighted_bce_elemwise, **kwargs)
    return loss * sup.shape[1]              # pythia: mean * supervision.size(1)


_LOSS_REGISTRY = {
    "logit_bce": logit_bce,
    "attention_supervision": attention_supervision,
}


class MultiLoss:
    """JAX/Pallas port of pythia MultiLoss: weighted sum of registered losses."""

    def __init__(self, params):
        self.loss_names = []
        self.losses = []
        self.losses_weights = []
        for loss_params in params["params"]:
            name = loss_params["type"]
            if name not in _LOSS_REGISTRY:
                raise ValueError(
                    "No loss named {} is registered to registry".format(name))
            self.loss_names.append(name)
            self.losses.append(_LOSS_REGISTRY[name])
            self.losses_weights.append(loss_params.get("weight", 1.0))

    def __call__(self, sample_list, model_output, *args, **kwargs):
        loss = jnp.float32(0.0)
        for weight, loss_fn in zip(self.losses_weights, self.losses):
            loss = loss + weight * loss_fn(sample_list, model_output,
                                           *args, **kwargs)
        return loss


if __name__ == "__main__":
    key = jax.random.PRNGKey(0)
    ks = jax.random.split(key, 8)

    # Small shapes consistent with the module (VQA-style answer classification
    # + attention supervision): batch=16, num_answers=32, num_regions=64.
    batch, num_answers, num_regions = 16, 32, 64

    scores = jax.random.normal(ks[0], (batch, num_answers), jnp.float32) * 2.0
    targets = (jax.random.uniform(ks[1], (batch, num_answers)) > 0.5).astype(jnp.float32)
    attentions = jax.nn.sigmoid(jax.random.normal(ks[2], (batch, num_regions), jnp.float32))
    attention_sup = (jax.random.uniform(ks[3], (batch, num_regions)) > 0.7).astype(jnp.float32)

    sample_list = {"targets": targets, "attention_supervision": attention_sup}
    model_output = {"scores": scores, "attentions": [attentions]}

    multi = MultiLoss({"params": [
        {"type": "logit_bce", "weight": 0.3},
        {"type": "attention_supervision", "weight": 0.7},
    ]})

    # Force the Pallas path so the kernel is exercised even at small shapes.
    loss = jax.block_until_ready(multi(sample_list, model_output, force_pallas=True))

    # Pure-JAX reference of the same weighted combination.
    ref_bce = jnp.mean(_bce_with_logits_elemwise(scores, targets)) * num_answers
    ref_att = jnp.mean(_weighted_bce_elemwise(attentions, attention_sup)) * num_regions
    ref = 0.3 * ref_bce + 0.7 * ref_att
    assert jnp.allclose(loss, ref, rtol=1e-5, atol=1e-5), (loss, ref)

    # The small-N pure-JAX fallback path must agree as well.
    loss_fb = jax.block_until_ready(multi(sample_list, model_output))
    assert jnp.allclose(loss_fb, ref, rtol=1e-5, atol=1e-5), (loss_fb, ref)

    # Multi-tile check: a tiny block budget forces row tiling, the 2-way
    # "core" grid axis and the partial row-edge mask (300 % 8 != 0), all
    # without any host pad/copy.
    xs = jax.random.normal(ks[4], (300, 1111), jnp.float32)
    ts = (jax.random.uniform(ks[5], (300, 1111)) > 0.5).astype(jnp.float32)
    got = jax.block_until_ready(_mean_elementwise_loss(
        xs, ts, _bce_with_logits_elemwise, force_pallas=True,
        block_bytes=64 * 1024))
    want = jnp.mean(_bce_with_logits_elemwise(xs, ts))
    assert jnp.allclose(got, want, rtol=1e-4, atol=1e-5), (got, want)

    # Column-tiled path with a partial column edge (9000 % 1024 != 0) and
    # native bf16 inputs (upcast in-kernel; no host cast, no host pad).
    xb = (jax.random.normal(ks[6], (64, 9000), jnp.float32)).astype(jnp.bfloat16)
    tb = (jax.random.uniform(ks[7], (64, 9000)) > 0.5).astype(jnp.bfloat16)
    got_b = jax.block_until_ready(_mean_elementwise_loss(
        xb, tb, _bce_with_logits_elemwise, force_pallas=True))
    want_b = jnp.mean(_bce_with_logits_elemwise(xb.astype(jnp.float32),
                                                tb.astype(jnp.float32)))
    assert jnp.allclose(got_b, want_b, rtol=1e-4, atol=1e-4), (got_b, want_b)

    print("KERNEL_OK")
</pallas_src>

<mosaic_0001>
module attributes {stable_mosaic.version = 11 : i64} {
  func.func @_partial_sum_kernel(%arg0: i32, %arg1: i32, %arg2: i32, %arg3: memref<16x32xf32, #tpu.memory_space<vmem>>, %arg4: memref<16x32xf32, #tpu.memory_space<vmem>>, %arg5: memref<8x128xf32, #tpu.memory_space<vmem>>, %arg6: memref<8x32xf32, #tpu.memory_space<vmem>>) attributes {dimension_semantics = [#tpu.dimension_semantics<parallel>, #tpu.dimension_semantics<arbitrary>, #tpu.dimension_semantics<arbitrary>], iteration_bounds = array<i64: 1, 1, 1>, scalar_prefetch = 0 : i64, scratch_operands = 1 : i64, tpu.core_type = #tpu.core_type<tc>, window_params = [{transform_indices = @transform_0, window_bounds = array<i64: 16, 32>}, {transform_indices = @transform_1, window_bounds = array<i64: 16, 32>}, {transform_indices = @transform_2, window_bounds = array<i64: 8, 128>}]} {
    %c0_i32 = arith.constant 0 : i32
    %0 = arith.cmpi eq, %arg1, %c0_i32 : i32
    %c0_i32_0 = arith.constant 0 : i32
    %1 = arith.cmpi eq, %arg2, %c0_i32_0 : i32
    %2 = arith.andi %0, %1 : i1
    %3 = arith.extui %2 : i1 to i32
    %c0_i32_1 = arith.constant 0 : i32
    %4 = arith.cmpi ne, %3, %c0_i32_1 : i32
    scf.if %4 {
      %cst_14 = arith.constant 0.000000e+00 : f32
      %27 = vector.broadcast %cst_14 : f32 to vector<8x32xf32>
      %c0_15 = arith.constant 0 : index
      %c0_16 = arith.constant 0 : index
      %28 = vector.load %arg6[%c0_15, %c0_16] : memref<8x32xf32, #tpu.memory_space<vmem>>, vector<8x32xf32>
      tpu.vector_store %arg6[%c0_15, %c0_16], %27 {strides = array<i32>} : memref<8x32xf32, #tpu.memory_space<vmem>>, vector<8x32xf32>,
    } else {
    }
    %c0 = arith.constant 0 : index
    %c0_2 = arith.constant 0 : index
    %5 = vector.load %arg3[%c0, %c0_2] : memref<16x32xf32, #tpu.memory_space<vmem>>, vector<16x32xf32>
    %c0_3 = arith.constant 0 : index
    %c0_4 = arith.constant 0 : index
    %6 = vector.load %arg4[%c0_3, %c0_4] : memref<16x32xf32, #tpu.memory_space<vmem>>, vector<16x32xf32>
    %cst = arith.constant 0.000000e+00 : f32
    %7 = vector.broadcast %cst : f32 to vector<16x32xf32>
    %8 = arith.maximumf %5, %7 : vector<16x32xf32>
    %9 = arith.mulf %5, %6 : vector<16x32xf32>
    %10 = arith.subf %8, %9 : vector<16x32xf32>
    %11 = math.absf %5 : vector<16x32xf32>
    %cst_5 = arith.constant 0.000000e+00 : f32
    %12 = vector.broadcast %cst_5 : f32 to vector<16x32xf32>
    %13 = arith.subf %12, %11 : vector<16x32xf32>
    %14 = math.exp %13 : vector<16x32xf32>
    %15 = math.log1p %14 : vector<16x32xf32>
    %16 = arith.addf %10, %15 : vector<16x32xf32>
    %17 = vector.shape_cast %16 : vector<16x32xf32> to vector<2x8x32xf32>
    %cst_6 = arith.constant dense<0.000000e+00> : vector<8x32xf32>
    %18 = vector.multi_reduction <add>, %17, %cst_6 [0] : vector<2x8x32xf32> to vector<8x32xf32>
    %c0_7 = arith.constant 0 : index
    %c0_8 = arith.constant 0 : index
    %19 = vector.load %arg6[%c0_7, %c0_8] : memref<8x32xf32, #tpu.memory_space<vmem>>, vector<8x32xf32>
    %20 = arith.addf %19, %18 : vector<8x32xf32>
    %c0_9 = arith.constant 0 : index
    %c0_10 = arith.constant 0 : index
    %21 = vector.load %arg6[%c0_9, %c0_10] : memref<8x32xf32, #tpu.memory_space<vmem>>, vector<8x32xf32>
    tpu.vector_store %arg6[%c0_9, %c0_10], %20 {strides = array<i32>} : memref<8x32xf32, #tpu.memory_space<vmem>>, vector<8x32xf32>,
    %c0_i32_11 = arith.constant 0 : i32
    %22 = arith.cmpi eq, %arg1, %c0_i32_11 : i32
    %c0_i32_12 = arith.constant 0 : i32
    %23 = arith.cmpi eq, %arg2, %c0_i32_12 : i32
    %24 = arith.andi %22, %23 : i1
    %25 = arith.extui %24 : i1 to i32
    %c0_i32_13 = arith.constant 0 : i32
    %26 = arith.cmpi ne, %25, %c0_i32_13 : i32
    scf.if %26 {
      %c0_14 = arith.constant 0 : index
      %c0_15 = arith.constant 0 : index
      %27 = vector.load %arg6[%c0_14, %c0_15] : memref<8x32xf32, #tpu.memory_space<vmem>>, vector<8x32xf32>
      %28 = vector.shape_cast %27 : vector<8x32xf32> to vector<1x8x32xf32>
      %cst_16 = arith.constant dense<0.000000e+00> : vector<1xf32>
      %29 = vector.multi_reduction <add>, %28, %cst_16 [1, 2] : vector<1x8x32xf32> to vector<1xf32>
      %30 = vector.shape_cast %29 : vector<1xf32> to vector<1x1x1xf32>
      %31 = vector.extract %30[0, 0, 0] : f32 from vector<1x1x1xf32>
      %32 = vector.broadcast %31 : f32 to vector<8x128xf32>
      %c0_17 = arith.constant 0 : index
      %c0_18 = arith.constant 0 : index
      %33 = vector.load %arg5[%c0_17, %c0_18] : memref<8x128xf32, #tpu.memory_space<vmem>>, vector<8x128xf32>
      tpu.vector_store %arg5[%c0_17, %c0_18], %32 {strides = array<i32>} : memref<8x128xf32, #tpu.memory_space<vmem>>, vector<8x128xf32>,
    } else {
    }
    return
  }
  func.func @transform_0(%arg0: i32, %arg1: i32, %arg2: i32) -> (i32, i32) {
    %c1_i32 = arith.constant 1 : i32
    %0 = arith.muli %arg0, %c1_i32 : i32
    %1 = arith.addi %0, %arg1 : i32
    %c0_i32 = arith.constant 0 : i32
    return %1, %arg2 : i32, i32
  }
  func.func @transform_1(%arg0: i32, %arg1: i32, %arg2: i32) -> (i32, i32) {
    %c1_i32 = arith.constant 1 : i32
    %0 = arith.muli %arg0, %c1_i32 : i32
    %1 = arith.addi %0, %arg1 : i32
    %c0_i32 = arith.constant 0 : i32
    return %1, %arg2 : i32, i32
  }
  func.func @transform_2(%arg0: i32, %arg1: i32, %arg2: i32) -> (i32, i32) {
    %c0_i32 = arith.constant 0 : i32
    %c0_i32_0 = arith.constant 0 : i32
    return %arg0, %c0_i32 : i32, i32
  }
}

</mosaic_0001>

<llo_original>
// kernel: tpu_custom_call.1
$region0: #{tpu_custom_call.1}
  #allocation0 [shape = 'u32[]', space=smem, size = 0x4, offset = 0x4, fixed_abs, tag = 'smem constant byte address 0x4 - core index']
  #allocation1 [shape = 'u32[144,128]{1,0:T(1,128)}', space=vmem, size = 0x12000, scoped, tag = 'internal scratch']
  #allocation2 [shape = 'f32[8,32]{1,0:T(8,128)}', space=vmem, size = 0x1000, scoped, tag = 'scratch operand']
  %s0 = inlined_call_operand.hbm [shape: f32[16,32], index: 0, kind: input, shape index: {}]
  %s1 = inlined_call_operand.hbm [shape: f32[16,32], index: 1, kind: input, shape index: {}]
  %s2 = inlined_call_operand.hbm [shape: f32[8,128], index: 2, kind: output, shape index: {}]
  %s3 = sld [smem:[#allocation0]]
  $region34: #{tpu_custom_call.1} parent=0
    _
  %s5 = ssub.s32 1, %s3
  %s6 = scalar_select 0, %s5, %s3
  $region1: #{tpu_custom_call.1} parent=0
    #allocation3 [shape = 'u8[8192]{0}', space=vmem, size = 0x2000, scoped, tag = 'input window, operand 0, single buffered']
    #allocation4 [shape = 's32[1]{0}', space=sflag, size = 0x4, scoped, tag = 'scoped memory for tpu_custom_call.1']
    #allocation5 [shape = 's32[1]{0}', space=sflag, size = 0x4, scoped, tag = 'scoped memory for tpu_custom_call.1']
    #allocation6 [shape = 'u8[8192]{0}', space=vmem, size = 0x2000, scoped, tag = 'input window, operand 1, single buffered']
    #allocation7 [shape = 's32[1]{0}', space=sflag, size = 0x4, scoped, tag = 'scoped memory for tpu_custom_call.1']
    #allocation8 [shape = 'u8[4096]{0}', space=vmem, size = 0x1000, scoped, tag = 'output window, operand 0, single buffered']
    %7 = vsyncpa [#allocation4], 0
    %8 = vsyncpa [#allocation7], 0
    %9 = vsyncpa [#allocation5], 0
    // Predicated region
    $region2: #{tpu_custom_call.1} parent=1 // pred_check
      _
    $region3: #{tpu_custom_call.1} parent=1 // pred_check_branch
      %11 = sbr.rel (0) target = $region5
    $region4: #{tpu_custom_call.1} parent=1 // pred_region
      %s12 = sadd.s32 0, 0
      %s13 = smul.u32 2, %s12
      %s15 = ssub.s32 256, 256
      %16 = vsyncadd [#allocation4], %s15
      %s17 = smul.addr %s13, 128
      %s18 = scalar_lea.hbm %s0, %s17
      %s19 = sshll.u32 [#allocation3], 4
      %s20 = int_to_ptr.vmem [resolvable:$true] %s19
      %25 = dma.hbm_to_vmem [thread:$0]  %s18, 256, %s20, [#allocation4], 128, 128, 8
    $region5: #{tpu_custom_call.1} parent=1 // pred_fallthru
      _
    // Predicated region
    $region6: #{tpu_custom_call.1} parent=1 // pred_check
      _
    $region7: #{tpu_custom_call.1} parent=1 // pred_check_branch
      %27 = sbr.rel (0) target = $region9
    $region8: #{tpu_custom_call.1} parent=1 // pred_region
      %s28 = sadd.s32 0, 0
      %s29 = smul.u32 2, %s28
      %s31 = ssub.s32 256, 256
      %32 = vsyncadd [#allocation7], %s31
      %s33 = smul.addr %s29, 128
      %s34 = scalar_lea.hbm %s1, %s33
      %s35 = sshll.u32 [#allocation6], 4
      %s36 = int_to_ptr.vmem [resolvable:$true] %s35
      %41 = dma.hbm_to_vmem [thread:$0]  %s34, 256, %s36, [#allocation7], 128, 128, 8
    $region9: #{tpu_custom_call.1} parent=1 // pred_fallthru
      _
    // Predicated region
    $region10: #{tpu_custom_call.1} parent=1 // pred_check
      _
    $region11: #{tpu_custom_call.1} parent=1 // pred_check_branch
      %43 = sbr.rel (0) target = $region13
    $region12: #{tpu_custom_call.1} parent=1 // pred_region
      %44 = dma.done [#allocation4], 256
    $region13: #{tpu_custom_call.1} parent=1 // pred_fallthru
      _
    // Predicated region
    $region14: #{tpu_custom_call.1} parent=1 // pred_check
      _
    $region15: #{tpu_custom_call.1} parent=1 // pred_check_branch
      %46 = sbr.rel (0) target = $region17
    $region16: #{tpu_custom_call.1} parent=1 // pred_region
      %47 = dma.done [#allocation7], 256
    $region17: #{tpu_custom_call.1} parent=1 // pred_fallthru
      _
    %s48 = sadd.s32 0, 0
    %s49 = smul.u32 2, %s48
    %s50 = sadd.s32 0, 0
    %s51 = smul.u32 2, %s50
    %p52 = scmp.eq.s32.totalorder 0, 0
    %p53 = scmp.eq.s32.totalorder 0, 0
    %p54 = pnand %p52, %p53
    %p55 = pneg %p54
    // Predicated region
    $region18: #{tpu_custom_call.1} parent=1 // pred_check
      _
    $region19: #{tpu_custom_call.1} parent=1 // pred_check_branch
      %57 = sbr.rel (%p54) target = $region21
    $region20: #{tpu_custom_call.1} parent=1 // pred_region
      %vm58 = vcmask 261120
      %59 = vst.msk [vmem:[#allocation2] sm:$0xff] %vm58, 0.0
    $region21: #{tpu_custom_call.1} parent=1 // pred_fallthru
      _
    %v60 = vld [vmem:[#allocation3] sm:$0xff]
    %v61 = vld [vmem:[#allocation3 + $0x8] sm:$0xff]
    %v62 = vld [vmem:[#allocation6] sm:$0xff]
    %v63 = vld [vmem:[#allocation6 + $0x8] sm:$0xff]
    %v64 = vmax.f32 %v60, 0.0
    %v65 = vmax.f32 %v61, 0.0
    %v66 = vmul.f32 %v60, %v62
    %v67 = vmul.f32 %v61, %v63
    %v68 = vsub.f32 %v64, %v66
    %v69 = vsub.f32 %v65, %v67
    %v70 = vand.u32 2147483647, %v60
    %v71 = vand.u32 2147483647, %v61
    %v72 = vsub.f32 0.0, %v70
    %v73 = vsub.f32 0.0, %v71
    %v74 = vmul.f32 %v72, 1.442695
    %v75 = vpow.pop %v74
    %v76 = vmul.f32 %v73, 1.442695
    %v77 = vpow.pop %v76
    %v78 = vadd.f32 %v75, 1.0
    %v79 = vlog2.pop %v78
    %v80 = vmul.f32 %v79, 0.6931472
    %v81 = vmul.f32 -0.5, %v75
    %v82 = vadd.f32 %v81, 1.0
    %v83 = vmul.f32 %v82, %v75
    %v84 = vand.u32 2147483647, %v75
    %vm85 = vcmp.lt.f32.partialorder %v84, 0.0004427343
    %v86 = vsel %vm85, %v83, %v80
    %v87 = vadd.f32 %v77, 1.0
    %v88 = vlog2.pop %v87
    %v89 = vmul.f32 %v88, 0.6931472
    %v90 = vmul.f32 -0.5, %v77
    %v91 = vadd.f32 %v90, 1.0
    %v92 = vmul.f32 %v91, %v77
    %v93 = vand.u32 2147483647, %v77
    %vm94 = vcmp.lt.f32.partialorder %v93, 0.0004427343
    %v95 = vsel %vm94, %v92, %v89
    %v96 = vadd.f32 %v68, %v86
    %v97 = vadd.f32 %v69, %v95
    %vm98 = vcmask 261120
    %v99 = vsel %vm98, %v96, 0.0
    %v100 = vsel %vm98, %v97, 0.0
    %v101 = vadd.f32 %v99, %v100
    %v102 = vld [vmem:[#allocation2] sm:$0xff]
    %v103 = vadd.f32 %v102, %v101
    %104 = vst.msk [vmem:[#allocation2] sm:$0xff] %vm98, %v103
    // Predicated region
    $region22: #{tpu_custom_call.1} parent=1 // pred_check
      _
    $region23: #{tpu_custom_call.1} parent=1 // pred_check_branch
      %106 = sbr.rel (%p54) target = $region25
    $region24: #{tpu_custom_call.1} parent=1 // pred_region
      %v107 = vld [vmem:[#allocation2] sm:$0xff]
      %v108 = vsel %vm98, %v107, 0.0
      %109 = vadd.xlane.f32.xlu0 %v108
      %v110 = vpop.xlane.xlu0 %109
      %v111 = vrot.slane %v110, 4
      %v112 = vadd.f32 %v110, %v111
      %v113 = vrot.slane %v112, 2
      %v114 = vadd.f32 %v112, %v113
      %v115 = vrot.slane %v114, 1
      %v116 = vadd.f32 %v114, %v115
      %s117 = vtos %v116
      %v118 = vstv %s117
      %119 = vst [vmem:[#allocation8] sm:$0xff] %v118
    $region25: #{tpu_custom_call.1} parent=1 // pred_fallthru
      _
    // Predicated region
    $region26: #{tpu_custom_call.1} parent=1 // pred_check
      _
    $region27: #{tpu_custom_call.1} parent=1 // pred_check_branch
      %121 = sbr.rel (0) target = $region29
    $region28: #{tpu_custom_call.1} parent=1 // pred_region
      %s123 = ssub.s32 128, 128
      %124 = vsyncadd [#allocation5], %s123
      %s126 = sshll.u32 [#allocation8], 4
      %s127 = int_to_ptr.vmem [resolvable:$true] %s126
      %129 = dma.vmem_to_hbm [thread:$0]  %s127, 128, %s2, [#allocation5]
    $region29: #{tpu_custom_call.1} parent=1 // pred_fallthru
      _
    // Predicated region
    $region30: #{tpu_custom_call.1} parent=1 // pred_check
      _
    $region31: #{tpu_custom_call.1} parent=1 // pred_check_branch
      %131 = sbr.rel (0) target = $region33
    $region32: #{tpu_custom_call.1} parent=1 // pred_region
      %132 = dma.done [#allocation5], 128
    $region33: #{tpu_custom_call.1} parent=1 // pred_fallthru
      _
    %133 = vsyncpa [#allocation4], 1
    %134 = vsyncpa [#allocation7], 1
    %135 = vsyncpa [#allocation5], 1

</llo_original>
